<compile_context>
chip_gen: v5e
topology: v5e:2x2
jax: 0.10.0
libtpu: 0.0.40
codegen_flags: <defaults>
</compile_context>

<pallas_src>
import functools

import jax
import jax.numpy as jnp
from jax.experimental import pallas as pl
from jax.experimental.pallas import tpu as pltpu


# ----------------------------- Pallas kernel -------------------------------

def _fused_gcn_kernel(x_ref, w_in_ref, b_in_ref, a_ref, w_l_ref, b_l_ref,
                      o_ref, emb_ref, *, num_users, num_nodes, num_layers):
    """Fused forward:
         emb = relu(X_comb @ W_comb + b_rowtype)        (both input linears)
         for l in layers: emb = relu(A_hat @ (emb @ W_l) + b_l)
       All operands live in VMEM; matmuls run bf16 -> f32 on the MXU,
       the bias+relu epilogue runs in f32 on the VPU.
    """
    n_pad, d_pad = emb_ref.shape

    # ---- fused input linears (block-diagonal X_comb / W_comb) -------------
    y = jnp.dot(x_ref[...], w_in_ref[...], preferred_element_type=jnp.float32)

    b_in = b_in_ref[...]                                   # (2, d_pad) f32
    row = jax.lax.broadcasted_iota(jnp.int32, (n_pad, d_pad), 0)
    bias0 = jnp.where(row < num_users, b_in[0:1, :], b_in[1:2, :])
    bias0 = jnp.where(row < num_nodes, bias0, 0.0)         # keep pad rows zero
    emb_ref[...] = jnp.maximum(y + bias0, 0.0)

    # A_hat (already bf16) is loaded once and reused by every layer.
    a_bf = a_ref[...]

    # ---- GCN layers, embedding resident in VMEM scratch --------------------
    for l in range(num_layers):              # static unroll (small num_layers)
        xw = jnp.dot(emb_ref[...].astype(jnp.bfloat16), w_l_ref[l],
                     preferred_element_type=jnp.float32)
        y = jnp.dot(a_bf, xw.astype(jnp.bfloat16),
                    preferred_element_type=jnp.float32)
        emb_ref[...] = jnp.maximum(y + b_l_ref[l], 0.0)    # b_l_ref[l]: (1, d_pad)

    o_ref[...] = emb_ref[...]


def _full_spec(shape):
    # single grid point -> full-array block, whole operand resident in VMEM
    return pl.BlockSpec(shape, lambda: (0,) * len(shape))


def fused_gcn_forward(x_comb, w_in, b_in, a_hat, w_layers, b_layers,
                      *, num_users, num_nodes):
    n_pad, k_pad = x_comb.shape
    d_pad = w_in.shape[1]
    num_layers = w_layers.shape[0]

    kernel = functools.partial(_fused_gcn_kernel, num_users=num_users,
                               num_nodes=num_nodes, num_layers=num_layers)

    flops = int(2 * n_pad * k_pad * d_pad
                + num_layers * (2 * n_pad * d_pad * d_pad
                                + 2 * n_pad * n_pad * d_pad))
    bytes_accessed = int(2 * (x_comb.size + w_in.size + a_hat.size
                              + w_layers.size)                       # bf16 in
                         + 4 * (b_in.size + b_layers.size)           # f32 in
                         + 4 * n_pad * d_pad)                        # f32 out

    return pl.pallas_call(
        kernel,
        out_shape=jax.ShapeDtypeStruct((n_pad, d_pad), jnp.float32),
        in_specs=[_full_spec(x_comb.shape), _full_spec(w_in.shape),
                  _full_spec(b_in.shape), _full_spec(a_hat.shape),
                  _full_spec(w_layers.shape), _full_spec(b_layers.shape)],
        out_specs=_full_spec((n_pad, d_pad)),
        scratch_shapes=[pltpu.VMEM((n_pad, d_pad), jnp.float32)],
        compiler_params=pltpu.CompilerParams(
            vmem_limit_bytes=16 * 1024 * 1024),
        cost_estimate=pl.CostEstimate(flops=flops, transcendentals=0,
                                      bytes_accessed=bytes_accessed),
    )(x_comb, w_in, b_in, a_hat, w_layers, b_layers)


# ------------------------------ glue (JAX) ---------------------------------

def _round_up(x, m):
    return ((x + m - 1) // m) * m


def gcn_norm_dense(adj, add_self_loops=False):
    """Symmetric normalization D^-1/2 (A [+ I]) D^-1/2 (dense)."""
    if add_self_loops:
        adj = adj + jnp.eye(adj.shape[0], dtype=adj.dtype)
    deg = jnp.sum(adj, axis=1)
    dinv = jnp.where(deg > 0, jax.lax.rsqrt(deg), 0.0)
    return adj * dinv[:, None] * dinv[None, :]


def init_params(key, feat_user, feat_food, embedding_dim, num_layers):
    keys = jax.random.split(key, 2 * (2 + num_layers))
    ki = iter(keys)
    params = {}
    params["w_user"] = jax.random.normal(next(ki), (feat_user, embedding_dim),
                                         jnp.float32) * 0.1
    params["b_user"] = jax.random.normal(next(ki), (1, embedding_dim),
                                         jnp.float32) * 0.1
    params["w_food"] = jax.random.normal(next(ki), (feat_food, embedding_dim),
                                         jnp.float32) * 0.1
    params["b_food"] = jax.random.normal(next(ki), (1, embedding_dim),
                                         jnp.float32) * 0.1
    params["layers"] = []
    for _ in range(num_layers):
        w = jax.random.normal(next(ki), (embedding_dim, embedding_dim),
                              jnp.float32) * 0.1
        b = jax.random.normal(next(ki), (1, embedding_dim), jnp.float32) * 0.1
        params["layers"].append((w, b))
    return params


@functools.partial(jax.jit, static_argnames=("num_users", "num_items"))
def gcn_model_forward(params, x_user, x_food, adj, num_users, num_items):
    n = num_users + num_items
    d = params["w_user"].shape[1]
    fu = params["w_user"].shape[0]
    ff = params["w_food"].shape[0]

    n_pad = _round_up(n, 128)
    d_pad = _round_up(d, 128)
    k_pad = _round_up(fu + ff, 128)

    # GCNConv-style symmetric normalization (add_self_loops=False matches the
    # module's default constructor argument).
    a_hat = gcn_norm_dense(adj, add_self_loops=False)
    a_pad = jnp.zeros((n_pad, n_pad), jnp.float32).at[:n, :n].set(a_hat)

    # Block-diagonal packing of the two input linears: user rows occupy
    # feature columns [0, fu), food rows occupy [fu, fu+ff), so one matmul
    # applies the correct per-node-type Linear and no concatenate is needed.
    x_comb = jnp.zeros((n_pad, k_pad), jnp.float32)
    x_comb = x_comb.at[:num_users, :fu].set(x_user)
    x_comb = x_comb.at[num_users:n, fu:fu + ff].set(x_food)

    w_in = jnp.zeros((k_pad, d_pad), jnp.float32)
    w_in = w_in.at[:fu, :d].set(params["w_user"])
    w_in = w_in.at[fu:fu + ff, :d].set(params["w_food"])

    b_in = jnp.zeros((2, d_pad), jnp.float32)
    b_in = b_in.at[0, :d].set(params["b_user"][0])
    b_in = b_in.at[1, :d].set(params["b_food"][0])

    num_layers = len(params["layers"])
    w_l = jnp.zeros((num_layers, d_pad, d_pad), jnp.float32)
    b_l = jnp.zeros((num_layers, 1, d_pad), jnp.float32)
    for i, (w, b) in enumerate(params["layers"]):
        w_l = w_l.at[i, :d, :d].set(w)
        b_l = b_l.at[i, 0, :d].set(b[0])

    out = fused_gcn_forward(
        x_comb.astype(jnp.bfloat16), w_in.astype(jnp.bfloat16), b_in,
        a_pad.astype(jnp.bfloat16), w_l.astype(jnp.bfloat16), b_l,
        num_users=num_users, num_nodes=n)

    emb = out[:n, :d]
    users_emb_final = emb[:num_users]
    items_emb_final = emb[num_users:]
    return users_emb_final, users_emb_final, items_emb_final, items_emb_final


def reference_forward(params, x_user, x_food, adj, num_users):
    """Pure-JAX f32 reference mirroring the PyTorch module semantics."""
    a_hat = gcn_norm_dense(adj, add_self_loops=False)
    h_user = jax.nn.relu(x_user @ params["w_user"] + params["b_user"])
    h_food = jax.nn.relu(x_food @ params["w_food"] + params["b_food"])
    emb = jnp.concatenate([h_user, h_food], axis=0)
    for (w, b) in params["layers"]:
        emb = jax.nn.relu(a_hat @ (emb @ w) + b)
    return emb[:num_users], emb[num_users:]


# --------------------------------- main -------------------------------------

if __name__ == "__main__":
    num_users = 8
    num_items = 16
    feat_user = 12
    feat_food = 20
    embedding_dim = 32
    num_layers = 2
    N = num_users + num_items

    key = jax.random.PRNGKey(0)
    k_feat_u, k_feat_f, k_edge, k_params = jax.random.split(key, 4)

    x_user = jax.random.normal(k_feat_u, (num_users, feat_user), jnp.float32)
    x_food = jax.random.normal(k_feat_f, (num_items, feat_food), jnp.float32)

    # Deterministic bipartite user-item interaction graph, symmetrized.
    interact = (jax.random.uniform(k_edge, (num_users, num_items)) < 0.3
                ).astype(jnp.float32)
    adj = jnp.zeros((N, N), jnp.float32)
    adj = adj.at[:num_users, num_users:].set(interact)
    adj = adj.at[num_users:, :num_users].set(interact.T)

    params = init_params(k_params, feat_user, feat_food, embedding_dim,
                         num_layers)

    u1, u2, i1, i2 = gcn_model_forward(params, x_user, x_food, adj,
                                       num_users, num_items)
    jax.block_until_ready((u1, u2, i1, i2))

    assert u1.shape == (num_users, embedding_dim)
    assert i1.shape == (num_items, embedding_dim)

    # Numerical sanity check against the f32 pure-JAX reference
    # (kernel uses bf16 MXU inputs -> generous tolerance).
    ref_u, ref_i = reference_forward(params, x_user, x_food, adj, num_users)
    err = float(jnp.max(jnp.abs(jnp.concatenate([u1, i1], axis=0)
                                - jnp.concatenate([ref_u, ref_i], axis=0))))
    assert err < 1e-1, f"max abs error vs reference too large: {err}"

    print("KERNEL_OK")
</pallas_src>

<mosaic_0001>
module attributes {stable_mosaic.version = 11 : i64} {
  func.func @_fused_gcn_kernel(%arg0: memref<128x128xbf16, #tpu.memory_space<vmem>>, %arg1: memref<128x128xbf16, #tpu.memory_space<vmem>>, %arg2: memref<2x128xf32, #tpu.memory_space<vmem>>, %arg3: memref<128x128xbf16, #tpu.memory_space<vmem>>, %arg4: memref<2x128x128xbf16, #tpu.memory_space<vmem>>, %arg5: memref<2x1x128xf32, #tpu.memory_space<vmem>>, %arg6: memref<128x128xf32, #tpu.memory_space<vmem>>, %arg7: memref<128x128xf32, #tpu.memory_space<vmem>>) attributes {dimension_semantics = [], scalar_prefetch = 0 : i64, scratch_operands = 1 : i64, tpu.core_type = #tpu.core_type<tc>} {
    %c0 = arith.constant 0 : index
    %c0_0 = arith.constant 0 : index
    %0 = vector.load %arg0[%c0, %c0_0] : memref<128x128xbf16, #tpu.memory_space<vmem>>, vector<128x128xbf16>
    %c0_1 = arith.constant 0 : index
    %c0_2 = arith.constant 0 : index
    %1 = vector.load %arg1[%c0_1, %c0_2] : memref<128x128xbf16, #tpu.memory_space<vmem>>, vector<128x128xbf16>
    %cst = arith.constant dense<0.000000e+00> : vector<128x128xf32>
    %2 = tpu.matmul %0, %1, %cst {dimension_numbers = #tpu.dot_dimension_numbers<[1], [0], [0], [1], [0, 0, 1, 1], [], []>} : vector<128x128xbf16>, vector<128x128xbf16>, vector<128x128xf32> -> vector<128x128xf32>
    %c0_3 = arith.constant 0 : index
    %c0_4 = arith.constant 0 : index
    %3 = vector.load %arg2[%c0_3, %c0_4] : memref<2x128xf32, #tpu.memory_space<vmem>>, vector<2x128xf32>
    %4 = tpu.iota {dimensions = array<i32: 0>} : vector<128x128xi32>
    %c8_i32 = arith.constant 8 : i32
    %5 = vector.broadcast %c8_i32 : i32 to vector<128x128xi32>
    %6 = arith.cmpi slt, %4, %5 : vector<128x128xi32>
    %7 = vector.extract_strided_slice %3 {offsets = [0, 0], sizes = [1, 128], strides = [1, 1]} : vector<2x128xf32> to vector<1x128xf32>
    %8 = vector.extract_strided_slice %3 {offsets = [1, 0], sizes = [1, 128], strides = [1, 1]} : vector<2x128xf32> to vector<1x128xf32>
    %9 = vector.shape_cast %7 : vector<1x128xf32> to vector<1x128xf32>
    %10 = vector.broadcast %9 : vector<1x128xf32> to vector<128x128xf32>
    %11 = vector.shape_cast %8 : vector<1x128xf32> to vector<1x128xf32>
    %12 = vector.broadcast %11 : vector<1x128xf32> to vector<128x128xf32>
    %13 = arith.select %6, %10, %12 : vector<128x128xi1>, vector<128x128xf32>
    %c24_i32 = arith.constant 24 : i32
    %14 = vector.broadcast %c24_i32 : i32 to vector<128x128xi32>
    %15 = arith.cmpi slt, %4, %14 : vector<128x128xi32>
    %cst_5 = arith.constant 0.000000e+00 : f32
    %16 = vector.broadcast %cst_5 : f32 to vector<128x128xf32>
    %17 = arith.select %15, %13, %16 : vector<128x128xi1>, vector<128x128xf32>
    %18 = arith.addf %2, %17 : vector<128x128xf32>
    %cst_6 = arith.constant 0.000000e+00 : f32
    %19 = vector.broadcast %cst_6 : f32 to vector<128x128xf32>
    %20 = arith.maximumf %18, %19 : vector<128x128xf32>
    %c0_7 = arith.constant 0 : index
    %c0_8 = arith.constant 0 : index
    %21 = vector.load %arg7[%c0_7, %c0_8] : memref<128x128xf32, #tpu.memory_space<vmem>>, vector<128x128xf32>
    tpu.vector_store %arg7[%c0_7, %c0_8], %20 {strides = array<i32>} : memref<128x128xf32, #tpu.memory_space<vmem>>, vector<128x128xf32>,
    %c0_9 = arith.constant 0 : index
    %c0_10 = arith.constant 0 : index
    %22 = vector.load %arg3[%c0_9, %c0_10] : memref<128x128xbf16, #tpu.memory_space<vmem>>, vector<128x128xbf16>
    %c0_11 = arith.constant 0 : index
    %c0_12 = arith.constant 0 : index
    %23 = vector.load %arg7[%c0_11, %c0_12] : memref<128x128xf32, #tpu.memory_space<vmem>>, vector<128x128xf32>
    %24 = arith.truncf %23 : vector<128x128xf32> to vector<128x128xbf16>
    %c0_13 = arith.constant 0 : index
    %c0_14 = arith.constant 0 : index
    %c0_15 = arith.constant 0 : index
    %25 = vector.load %arg4[%c0_13, %c0_14, %c0_15] : memref<2x128x128xbf16, #tpu.memory_space<vmem>>, vector<1x128x128xbf16>
    %26 = vector.shape_cast %25 : vector<1x128x128xbf16> to vector<128x128xbf16>
    %cst_16 = arith.constant dense<0.000000e+00> : vector<128x128xf32>
    %27 = tpu.matmul %24, %26, %cst_16 {dimension_numbers = #tpu.dot_dimension_numbers<[1], [0], [0], [1], [0, 0, 1, 1], [], []>} : vector<128x128xbf16>, vector<128x128xbf16>, vector<128x128xf32> -> vector<128x128xf32>
    %28 = arith.truncf %27 : vector<128x128xf32> to vector<128x128xbf16>
    %cst_17 = arith.constant dense<0.000000e+00> : vector<128x128xf32>
    %29 = tpu.matmul %22, %28, %cst_17 {dimension_numbers = #tpu.dot_dimension_numbers<[1], [0], [0], [1], [0, 0, 1, 1], [], []>} : vector<128x128xbf16>, vector<128x128xbf16>, vector<128x128xf32> -> vector<128x128xf32>
    %c0_18 = arith.constant 0 : index
    %c0_19 = arith.constant 0 : index
    %c0_20 = arith.constant 0 : index
    %30 = vector.load %arg5[%c0_18, %c0_19, %c0_20] : memref<2x1x128xf32, #tpu.memory_space<vmem>>, vector<1x1x128xf32>
    %31 = vector.shape_cast %30 : vector<1x1x128xf32> to vector<1x128xf32>
    %32 = vector.broadcast %31 : vector<1x128xf32> to vector<128x128xf32>
    %33 = arith.addf %29, %32 : vector<128x128xf32>
    %cst_21 = arith.constant 0.000000e+00 : f32
    %34 = vector.broadcast %cst_21 : f32 to vector<128x128xf32>
    %35 = arith.maximumf %33, %34 : vector<128x128xf32>
    %c0_22 = arith.constant 0 : index
    %c0_23 = arith.constant 0 : index
    %36 = vector.load %arg7[%c0_22, %c0_23] : memref<128x128xf32, #tpu.memory_space<vmem>>, vector<128x128xf32>
    tpu.vector_store %arg7[%c0_22, %c0_23], %35 {strides = array<i32>} : memref<128x128xf32, #tpu.memory_space<vmem>>, vector<128x128xf32>,
    %c0_24 = arith.constant 0 : index
    %c0_25 = arith.constant 0 : index
    %37 = vector.load %arg7[%c0_24, %c0_25] : memref<128x128xf32, #tpu.memory_space<vmem>>, vector<128x128xf32>
    %38 = arith.truncf %37 : vector<128x128xf32> to vector<128x128xbf16>
    %c1 = arith.constant 1 : index
    %c0_26 = arith.constant 0 : index
    %c0_27 = arith.constant 0 : index
    %39 = vector.load %arg4[%c1, %c0_26, %c0_27] : memref<2x128x128xbf16, #tpu.memory_space<vmem>>, vector<1x128x128xbf16>
    %40 = vector.shape_cast %39 : vector<1x128x128xbf16> to vector<128x128xbf16>
    %cst_28 = arith.constant dense<0.000000e+00> : vector<128x128xf32>
    %41 = tpu.matmul %38, %40, %cst_28 {dimension_numbers = #tpu.dot_dimension_numbers<[1], [0], [0], [1], [0, 0, 1, 1], [], []>} : vector<128x128xbf16>, vector<128x128xbf16>, vector<128x128xf32> -> vector<128x128xf32>
    %42 = arith.truncf %41 : vector<128x128xf32> to vector<128x128xbf16>
    %cst_29 = arith.constant dense<0.000000e+00> : vector<128x128xf32>
    %43 = tpu.matmul %22, %42, %cst_29 {dimension_numbers = #tpu.dot_dimension_numbers<[1], [0], [0], [1], [0, 0, 1, 1], [], []>} : vector<128x128xbf16>, vector<128x128xbf16>, vector<128x128xf32> -> vector<128x128xf32>
    %c1_30 = arith.constant 1 : index
    %c0_31 = arith.constant 0 : index
    %c0_32 = arith.constant 0 : index
    %44 = vector.load %arg5[%c1_30, %c0_31, %c0_32] : memref<2x1x128xf32, #tpu.memory_space<vmem>>, vector<1x1x128xf32>
    %45 = vector.shape_cast %44 : vector<1x1x128xf32> to vector<1x128xf32>
    %46 = vector.broadcast %45 : vector<1x128xf32> to vector<128x128xf32>
    %47 = arith.addf %43, %46 : vector<128x128xf32>
    %cst_33 = arith.constant 0.000000e+00 : f32
    %48 = vector.broadcast %cst_33 : f32 to vector<128x128xf32>
    %49 = arith.maximumf %47, %48 : vector<128x128xf32>
    %c0_34 = arith.constant 0 : index
    %c0_35 = arith.constant 0 : index
    %50 = vector.load %arg7[%c0_34, %c0_35] : memref<128x128xf32, #tpu.memory_space<vmem>>, vector<128x128xf32>
    tpu.vector_store %arg7[%c0_34, %c0_35], %49 {strides = array<i32>} : memref<128x128xf32, #tpu.memory_space<vmem>>, vector<128x128xf32>,
    %c0_36 = arith.constant 0 : index
    %c0_37 = arith.constant 0 : index
    %51 = vector.load %arg7[%c0_36, %c0_37] : memref<128x128xf32, #tpu.memory_space<vmem>>, vector<128x128xf32>
    %c0_38 = arith.constant 0 : index
    %c0_39 = arith.constant 0 : index
    %52 = vector.load %arg6[%c0_38, %c0_39] : memref<128x128xf32, #tpu.memory_space<vmem>>, vector<128x128xf32>
    tpu.vector_store %arg6[%c0_38, %c0_39], %51 {strides = array<i32>} : memref<128x128xf32, #tpu.memory_space<vmem>>, vector<128x128xf32>,
    return
  }
}

</mosaic_0001>

<llo_original>
// kernel: gcn_model_forward.1
$region0: #{gcn_model_forward.1}
  #allocation0 [shape = 'u32[]', space=smem, size = 0x4, offset = 0x4, fixed_abs, tag = 'smem constant byte address 0x4 - core index']
  #allocation1 [shape = 'u32[72,128]{1,0:T(1,128)}', space=vmem, size = 0x9000, scoped, tag = 'internal scratch']
  #allocation2 [shape = 'f32[128,128]{1,0:T(8,128)}', space=vmem, size = 0x10000, scoped, tag = 'scratch operand']
  %s0 = inlined_call_operand.vmem [shape: bf16[128,128], index: 0, kind: input, shape index: {}]
  %s1 = inlined_call_operand.vmem [shape: bf16[128,128], index: 1, kind: input, shape index: {}]
  %s2 = inlined_call_operand.vmem [shape: f32[2,128], index: 2, kind: input, shape index: {}]
  %s3 = inlined_call_operand.vmem [shape: bf16[128,128], index: 3, kind: input, shape index: {}]
  %s4 = inlined_call_operand.vmem [shape: bf16[2,128,128], index: 4, kind: input, shape index: {}]
  %s5 = inlined_call_operand.vmem [shape: f32[2,1,128], index: 5, kind: input, shape index: {}]
  %s6 = inlined_call_operand.vmem [shape: f32[128,128], index: 6, kind: output, shape index: {}]
  %s7 = sld [smem:[#allocation0]]
  $region34: #{gcn_model_forward.1} parent=0
    _
  %s9 = ssub.s32 1, %s7
  %s10 = scalar_select 0, %s9, %s7
  // Predicated region
  $region2: #{gcn_model_forward.1} parent=0 // pred_check
    _
  $region3: #{gcn_model_forward.1} parent=0 // pred_check_branch
    %12 = sbr.rel (0) target = $region5
  $region4: #{gcn_model_forward.1} parent=0 // pred_region
    _
  $region5: #{gcn_model_forward.1} parent=0 // pred_fallthru
    _
  // Predicated region
  $region6: #{gcn_model_forward.1} parent=0 // pred_check
    _
  $region7: #{gcn_model_forward.1} parent=0 // pred_check_branch
    %14 = sbr.rel (0) target = $region9
  $region8: #{gcn_model_forward.1} parent=0 // pred_region
    _
  $region9: #{gcn_model_forward.1} parent=0 // pred_fallthru
    _
  // Predicated region
  $region10: #{gcn_model_forward.1} parent=0 // pred_check
    _
  $region11: #{gcn_model_forward.1} parent=0 // pred_check_branch
    %16 = sbr.rel (0) target = $region13
  $region12: #{gcn_model_forward.1} parent=0 // pred_region
    _
  $region13: #{gcn_model_forward.1} parent=0 // pred_fallthru
    _
  // Predicated region
  $region14: #{gcn_model_forward.1} parent=0 // pred_check
    _
  $region15: #{gcn_model_forward.1} parent=0 // pred_check_branch
    %18 = sbr.rel (0) target = $region17
  $region16: #{gcn_model_forward.1} parent=0 // pred_region
    _
  $region17: #{gcn_model_forward.1} parent=0 // pred_fallthru
    _
  // Predicated region
  $region18: #{gcn_model_forward.1} parent=0 // pred_check
    _
  $region19: #{gcn_model_forward.1} parent=0 // pred_check_branch
    %20 = sbr.rel (0) target = $region21
  $region20: #{gcn_model_forward.1} parent=0 // pred_region
    _
  $region21: #{gcn_model_forward.1} parent=0 // pred_fallthru
    _
  // Predicated region
  $region22: #{gcn_model_forward.1} parent=0 // pred_check
    _
  $region23: #{gcn_model_forward.1} parent=0 // pred_check_branch
    %22 = sbr.rel (0) target = $region25
  $region24: #{gcn_model_forward.1} parent=0 // pred_region
    _
  $region25: #{gcn_model_forward.1} parent=0 // pred_fallthru
    _
  %v23 = vld [vmem:[%s0] sm:$0xf]
  %v24 = vld [vmem:[%s0 + $0x4] sm:$0xf]
  %v25 = vld [vmem:[%s0 + $0x8] sm:$0xf]
  %v26 = vld [vmem:[%s0 + $0xc] sm:$0xf]
  %v27 = vld [vmem:[%s0 + $0x10] sm:$0xf]
  %v28 = vld [vmem:[%s0 + $0x14] sm:$0xf]
  %v29 = vld [vmem:[%s0 + $0x18] sm:$0xf]
  %v30 = vld [vmem:[%s0 + $0x1c] sm:$0xf]
  %v31 = vld [vmem:[%s0 + $0x20] sm:$0xf]
  %v32 = vld [vmem:[%s0 + $0x24] sm:$0xf]
  %v33 = vld [vmem:[%s0 + $0x28] sm:$0xf]
  %v34 = vld [vmem:[%s0 + $0x2c] sm:$0xf]
  %v35 = vld [vmem:[%s0 + $0x30] sm:$0xf]
  %v36 = vld [vmem:[%s0 + $0x34] sm:$0xf]
  %v37 = vld [vmem:[%s0 + $0x38] sm:$0xf]
  %v38 = vld [vmem:[%s0 + $0x3c] sm:$0xf]
  %v39 = vld [vmem:[%s1] sm:$0xf]
  %v40 = vld [vmem:[%s1 + $0x4] sm:$0xf]
  %v41 = vld [vmem:[%s1 + $0x8] sm:$0xf]
  %v42 = vld [vmem:[%s1 + $0xc] sm:$0xf]
  %v43 = vld [vmem:[%s1 + $0x10] sm:$0xf]
  %v44 = vld [vmem:[%s1 + $0x14] sm:$0xf]
  %v45 = vld [vmem:[%s1 + $0x18] sm:$0xf]
  %v46 = vld [vmem:[%s1 + $0x1c] sm:$0xf]
  %v47 = vld [vmem:[%s1 + $0x20] sm:$0xf]
  %v48 = vld [vmem:[%s1 + $0x24] sm:$0xf]
  %v49 = vld [vmem:[%s1 + $0x28] sm:$0xf]
  %v50 = vld [vmem:[%s1 + $0x2c] sm:$0xf]
  %v51 = vld [vmem:[%s1 + $0x30] sm:$0xf]
  %v52 = vld [vmem:[%s1 + $0x34] sm:$0xf]
  %v53 = vld [vmem:[%s1 + $0x38] sm:$0xf]
  %v54 = vld [vmem:[%s1 + $0x3c] sm:$0xf]
  %v55 = vld [vmem:[%s2] sm:$0x3]
  %v56 = vlaneseq
  %v57 = vshrl.u32 %v56, 7
  %v58 = vadd.s32 %v57, 8
  %v59 = vadd.s32 %v57, 16
  %v60 = vadd.s32 %v57, 24
  %v61 = vadd.s32 %v57, 32
  %v62 = vadd.s32 %v57, 40
  %v63 = vadd.s32 %v57, 48
  %v64 = vadd.s32 %v57, 56
  %v65 = vadd.s32 %v57, 64
  %v66 = vadd.s32 %v57, 72
  %v67 = vadd.s32 %v57, 80
  %v68 = vadd.s32 %v57, 88
  %v69 = vadd.s32 %v57, 96
  %v70 = vadd.s32 %v57, 104
  %v71 = vadd.s32 %v57, 112
  %v72 = vadd.s32 %v57, 120
  %vm73 = vcmp.lt.s32.totalorder %v57, 8
  %vm74 = vcmp.lt.s32.totalorder %v58, 8
  %vm75 = vcmp.lt.s32.totalorder %v59, 8
  %vm76 = vcmp.lt.s32.totalorder %v60, 8
  %vm77 = vcmp.lt.s32.totalorder %v61, 8
  %vm78 = vcmp.lt.s32.totalorder %v62, 8
  %vm79 = vcmp.lt.s32.totalorder %v63, 8
  %vm80 = vcmp.lt.s32.totalorder %v64, 8
  %vm81 = vcmp.lt.s32.totalorder %v65, 8
  %vm82 = vcmp.lt.s32.totalorder %v66, 8
  %vm83 = vcmp.lt.s32.totalorder %v67, 8
  %vm84 = vcmp.lt.s32.totalorder %v68, 8
  %vm85 = vcmp.lt.s32.totalorder %v69, 8
  %vm86 = vcmp.lt.s32.totalorder %v70, 8
  %vm87 = vcmp.lt.s32.totalorder %v71, 8
  %vm88 = vcmp.lt.s32.totalorder %v72, 8
  %v89 = vperm.slane %v55, 0
  %v90 = vperm.slane %v55, 1
  %v91 = vsel %vm73, %v89, %v90
  %v92 = vsel %vm74, %v89, %v90
  %v93 = vsel %vm75, %v89, %v90
  %v94 = vsel %vm76, %v89, %v90
  %v95 = vsel %vm77, %v89, %v90
  %v96 = vsel %vm78, %v89, %v90
  %v97 = vsel %vm79, %v89, %v90
  %v98 = vsel %vm80, %v89, %v90
  %v99 = vsel %vm81, %v89, %v90
  %v100 = vsel %vm82, %v89, %v90
  %v101 = vsel %vm83, %v89, %v90
  %v102 = vsel %vm84, %v89, %v90
  %v103 = vsel %vm85, %v89, %v90
  %v104 = vsel %vm86, %v89, %v90
  %v105 = vsel %vm87, %v89, %v90
  %v106 = vsel %vm88, %v89, %v90
  %vm107 = vcmp.lt.s32.totalorder %v57, 24
  %vm108 = vcmp.lt.s32.totalorder %v58, 24
  %vm109 = vcmp.lt.s32.totalorder %v59, 24
  %vm110 = vcmp.lt.s32.totalorder %v60, 24
  %vm111 = vcmp.lt.s32.totalorder %v61, 24
  %vm112 = vcmp.lt.s32.totalorder %v62, 24
  %vm113 = vcmp.lt.s32.totalorder %v63, 24
  %vm114 = vcmp.lt.s32.totalorder %v64, 24
  %vm115 = vcmp.lt.s32.totalorder %v65, 24
  %vm116 = vcmp.lt.s32.totalorder %v66, 24
  %vm117 = vcmp.lt.s32.totalorder %v67, 24
  %vm118 = vcmp.lt.s32.totalorder %v68, 24
  %vm119 = vcmp.lt.s32.totalorder %v69, 24
  %vm120 = vcmp.lt.s32.totalorder %v70, 24
  %vm121 = vcmp.lt.s32.totalorder %v71, 24
  %vm122 = vcmp.lt.s32.totalorder %v72, 24
  %v123 = vsel %vm107, %v91, 0.0
  %v124 = vsel %vm108, %v92, 0.0
  %v125 = vsel %vm109, %v93, 0.0
  %v126 = vsel %vm110, %v94, 0.0
  %v127 = vsel %vm111, %v95, 0.0
  %v128 = vsel %vm112, %v96, 0.0
  %v129 = vsel %vm113, %v97, 0.0
  %v130 = vsel %vm114, %v98, 0.0
  %v131 = vsel %vm115, %v99, 0.0
  %v132 = vsel %vm116, %v100, 0.0
  %v133 = vsel %vm117, %v101, 0.0
  %v134 = vsel %vm118, %v102, 0.0
  %v135 = vsel %vm119, %v103, 0.0
  %v136 = vsel %vm120, %v104, 0.0
  %v137 = vsel %vm121, %v105, 0.0
  %v138 = vsel %vm122, %v106, 0.0
  %v155 = vunpack.c.l.b16 %v23
  %v156 = vunpack.c.l.b16 %v24
  %v157 = vunpack.c.l.b16 %v25
  %v158 = vunpack.c.l.b16 %v26
  %v159 = vunpack.c.l.b16 %v27
  %v160 = vunpack.c.l.b16 %v28
  %v161 = vunpack.c.l.b16 %v29
  %v162 = vunpack.c.l.b16 %v30
  %v163 = vunpack.c.l.b16 %v31
  %v164 = vunpack.c.l.b16 %v32
  %v165 = vunpack.c.l.b16 %v33
  %v166 = vunpack.c.l.b16 %v34
  %v167 = vunpack.c.l.b16 %v35
  %v168 = vunpack.c.l.b16 %v36
  %v169 = vunpack.c.l.b16 %v37
  %v170 = vunpack.c.l.b16 %v38
  %v171 = vpack.c.b16 %v156, %v155
  %v172 = vpack.c.b16 %v158, %v157
  %v173 = vpack.c.b16 %v160, %v159
  %v174 = vpack.c.b16 %v162, %v161
  %v175 = vpack.c.b16 %v164, %v163
  %v176 = vpack.c.b16 %v166, %v165
  %v177 = vpack.c.b16 %v168, %v167
  %v178 = vpack.c.b16 %v170, %v169
  %v203 = vunpack.c.l.b16 %v39
  %v204 = vunpack.c.l.b16 %v40
  %v205 = vunpack.c.l.b16 %v41
  %v206 = vunpack.c.l.b16 %v42
  %v207 = vunpack.c.l.b16 %v43
  %v208 = vunpack.c.l.b16 %v44
  %v209 = vunpack.c.l.b16 %v45
  %v210 = vunpack.c.l.b16 %v46
  %v211 = vunpack.c.l.b16 %v47
  %v212 = vunpack.c.l.b16 %v48
  %v213 = vunpack.c.l.b16 %v49
  %v214 = vunpack.c.l.b16 %v50
  %v215 = vunpack.c.l.b16 %v51
  %v216 = vunpack.c.l.b16 %v52
  %v217 = vunpack.c.l.b16 %v53
  %v218 = vunpack.c.l.b16 %v54
  %v219 = vpack.c.b16 %v204, %v203
  %v220 = vpack.c.b16 %v206, %v205
  %v221 = vpack.c.b16 %v208, %v207
  %v222 = vpack.c.b16 %v210, %v209
  %v223 = vpack.c.b16 %v212, %v211
  %v224 = vpack.c.b16 %v214, %v213
  %v225 = vpack.c.b16 %v216, %v215
  %v226 = vpack.c.b16 %v218, %v217
  %235 = vmatpush.bf16.msra.mxu0 %v226
  %236 = vmatpush.bf16.msra.mxu0 %v225
  %237 = vmatpush.bf16.msra.mxu0 %v224
  %238 = vmatpush.bf16.msra.mxu0 %v223
  %239 = vmatpush.bf16.msra.mxu0 %v222
  %240 = vmatpush.bf16.msra.mxu0 %v221
  %241 = vmatpush.bf16.msra.mxu0 %v220
  %242 = vmatpush.bf16.msra.mxu0 %v219
  %243 = vmatmul.bf16.gmra.mxu0 %v171
  %v244 = vpop.f32.mrf.mxu0
  %v245 = vadd.f32 %v123, %v244
  %v246 = vpop.f32.mrf.mxu0
  %v247 = vadd.f32 %v124, %v246
  %248 = vmatmul.bf16.gmra.mxu0 %v172
  %v249 = vpop.f32.mrf.mxu0
  %v250 = vadd.f32 %v125, %v249
  %v251 = vpop.f32.mrf.mxu0
  %v252 = vadd.f32 %v126, %v251
  %253 = vmatmul.bf16.gmra.mxu0 %v173
  %v254 = vpop.f32.mrf.mxu0
  %v255 = vadd.f32 %v127, %v254
  %v256 = vpop.f32.mrf.mxu0
  %v257 = vadd.f32 %v128, %v256
  %258 = vmatmul.bf16.gmra.mxu0 %v174
  %v259 = vpop.f32.mrf.mxu0
  %v260 = vadd.f32 %v129, %v259
  %v261 = vpop.f32.mrf.mxu0
  %v262 = vadd.f32 %v130, %v261
  %263 = vmatmul.bf16.gmra.mxu0 %v175
  %v264 = vpop.f32.mrf.mxu0
  %v265 = vadd.f32 %v131, %v264
  %v266 = vpop.f32.mrf.mxu0
  %v267 = vadd.f32 %v132, %v266
  %268 = vmatmul.bf16.gmra.mxu0 %v176
  %v269 = vpop.f32.mrf.mxu0
  %v270 = vadd.f32 %v133, %v269
  %v271 = vpop.f32.mrf.mxu0
  %v272 = vadd.f32 %v134, %v271
  %273 = vmatmul.bf16.gmra.mxu0 %v177
  %v274 = vpop.f32.mrf.mxu0
  %v275 = vadd.f32 %v135, %v274
  %v276 = vpop.f32.mrf.mxu0
  %v277 = vadd.f32 %v136, %v276
  %278 = vmatmul.bf16.gmra.mxu0 %v178
  %v279 = vpop.f32.mrf.mxu0
  %v280 = vadd.f32 %v137, %v279
  %v281 = vpop.f32.mrf.mxu0
  %v282 = vadd.f32 %v138, %v281
  %283 = vdwg.mxu0
  %v284 = vmax.f32 %v245, 0.0
  %v285 = vmax.f32 %v247, 0.0
  %v286 = vmax.f32 %v250, 0.0
  %v287 = vmax.f32 %v252, 0.0
  %v288 = vmax.f32 %v255, 0.0
  %v289 = vmax.f32 %v257, 0.0
  %v290 = vmax.f32 %v260, 0.0
  %v291 = vmax.f32 %v262, 0.0
  %v292 = vmax.f32 %v265, 0.0
  %v293 = vmax.f32 %v267, 0.0
  %v294 = vmax.f32 %v270, 0.0
  %v295 = vmax.f32 %v272, 0.0
  %v296 = vmax.f32 %v275, 0.0
  %v297 = vmax.f32 %v277, 0.0
  %v298 = vmax.f32 %v280, 0.0
  %v299 = vmax.f32 %v282, 0.0
  %300 = vst [vmem:[#allocation2] sm:$0xff] %v284
  %301 = vst [vmem:[#allocation2 + $0x8] sm:$0xff] %v285
  %302 = vst [vmem:[#allocation2 + $0x10] sm:$0xff] %v286
  %303 = vst [vmem:[#allocation2 + $0x18] sm:$0xff] %v287
  %304 = vst [vmem:[#allocation2 + $0x20] sm:$0xff] %v288
  %305 = vst [vmem:[#allocation2 + $0x28] sm:$0xff] %v289
  %306 = vst [vmem:[#allocation2 + $0x30] sm:$0xff] %v290
  %307 = vst [vmem:[#allocation2 + $0x38] sm:$0xff] %v291
  %308 = vst [vmem:[#allocation2 + $0x40] sm:$0xff] %v292
  %309 = vst [vmem:[#allocation2 + $0x48] sm:$0xff] %v293
  %310 = vst [vmem:[#allocation2 + $0x50] sm:$0xff] %v294
  %311 = vst [vmem:[#allocation2 + $0x58] sm:$0xff] %v295
  %312 = vst [vmem:[#allocation2 + $0x60] sm:$0xff] %v296
  %313 = vst [vmem:[#allocation2 + $0x68] sm:$0xff] %v297
  %314 = vst [vmem:[#allocation2 + $0x70] sm:$0xff] %v298
  %315 = vst [vmem:[#allocation2 + $0x78] sm:$0xff] %v299
  %v316 = vld [vmem:[%s3] sm:$0xf]
  %v317 = vld [vmem:[%s3 + $0x4] sm:$0xf]
  %v318 = vld [vmem:[%s3 + $0x8] sm:$0xf]
  %v319 = vld [vmem:[%s3 + $0xc] sm:$0xf]
  %v320 = vld [vmem:[%s3 + $0x10] sm:$0xf]
  %v321 = vld [vmem:[%s3 + $0x14] sm:$0xf]
  %v322 = vld [vmem:[%s3 + $0x18] sm:$0xf]
  %v323 = vld [vmem:[%s3 + $0x1c] sm:$0xf]
  %v324 = vld [vmem:[%s3 + $0x20] sm:$0xf]
  %v325 = vld [vmem:[%s3 + $0x24] sm:$0xf]
  %v326 = vld [vmem:[%s3 + $0x28] sm:$0xf]
  %v327 = vld [vmem:[%s3 + $0x2c] sm:$0xf]
  %v328 = vld [vmem:[%s3 + $0x30] sm:$0xf]
  %v329 = vld [vmem:[%s3 + $0x34] sm:$0xf]
  %v330 = vld [vmem:[%s3 + $0x38] sm:$0xf]
  %v331 = vld [vmem:[%s3 + $0x3c] sm:$0xf]
  %v332 = vld [vmem:[#allocation2] sm:$0xff]
  %v333 = vld [vmem:[#allocation2 + $0x8] sm:$0xff]
  %v334 = vld [vmem:[#allocation2 + $0x10] sm:$0xff]
  %v335 = vld [vmem:[#allocation2 + $0x18] sm:$0xff]
  %v336 = vld [vmem:[#allocation2 + $0x20] sm:$0xff]
  %v337 = vld [vmem:[#allocation2 + $0x28] sm:$0xff]
  %v338 = vld [vmem:[#allocation2 + $0x30] sm:$0xff]
  %v339 = vld [vmem:[#allocation2 + $0x38] sm:$0xff]
  %v340 = vld [vmem:[#allocation2 + $0x40] sm:$0xff]
  %v341 = vld [vmem:[#allocation2 + $0x48] sm:$0xff]
  %v342 = vld [vmem:[#allocation2 + $0x50] sm:$0xff]
  %v343 = vld [vmem:[#allocation2 + $0x58] sm:$0xff]
  %v344 = vld [vmem:[#allocation2 + $0x60] sm:$0xff]
  %v345 = vld [vmem:[#allocation2 + $0x68] sm:$0xff]
  %v346 = vld [vmem:[#allocation2 + $0x70] sm:$0xff]
  %v347 = vld [vmem:[#allocation2 + $0x78] sm:$0xff]
  %v348 = vpack.c.bf16 %v333, %v332
  %v349 = vpack.c.bf16 %v335, %v334
  %v350 = vpack.c.bf16 %v337, %v336
  %v351 = vpack.c.bf16 %v339, %v338
  %v352 = vpack.c.bf16 %v341, %v340
  %v353 = vpack.c.bf16 %v343, %v342
  %v354 = vpack.c.bf16 %v345, %v344
  %v355 = vpack.c.bf16 %v347, %v346
  %v356 = vld [vmem:[%s4] sm:$0xf]
  %v357 = vld [vmem:[%s4 + $0x4] sm:$0xf]
  %v358 = vld [vmem:[%s4 + $0x8] sm:$0xf]
  %v359 = vld [vmem:[%s4 + $0xc] sm:$0xf]
  %v360 = vld [vmem:[%s4 + $0x10] sm:$0xf]
  %v361 = vld [vmem:[%s4 + $0x14] sm:$0xf]
  %v362 = vld [vmem:[%s4 + $0x18] sm:$0xf]
  %v363 = vld [vmem:[%s4 + $0x1c] sm:$0xf]
  %v364 = vld [vmem:[%s4 + $0x20] sm:$0xf]
  %v365 = vld [vmem:[%s4 + $0x24] sm:$0xf]
  %v366 = vld [vmem:[%s4 + $0x28] sm:$0xf]
  %v367 = vld [vmem:[%s4 + $0x2c] sm:$0xf]
  %v368 = vld [vmem:[%s4 + $0x30] sm:$0xf]
  %v369 = vld [vmem:[%s4 + $0x34] sm:$0xf]
  %v370 = vld [vmem:[%s4 + $0x38] sm:$0xf]
  %v371 = vld [vmem:[%s4 + $0x3c] sm:$0xf]
  %v388 = vunpack.c.l.b16 %v356
  %v389 = vunpack.c.l.b16 %v357
  %v390 = vunpack.c.l.b16 %v358
  %v391 = vunpack.c.l.b16 %v359
  %v392 = vunpack.c.l.b16 %v360
  %v393 = vunpack.c.l.b16 %v361
  %v394 = vunpack.c.l.b16 %v362
  %v395 = vunpack.c.l.b16 %v363
  %v396 = vunpack.c.l.b16 %v364
  %v397 = vunpack.c.l.b16 %v365
  %v398 = vunpack.c.l.b16 %v366
  %v399 = vunpack.c.l.b16 %v367
  %v400 = vunpack.c.l.b16 %v368
  %v401 = vunpack.c.l.b16 %v369
  %v402 = vunpack.c.l.b16 %v370
  %v403 = vunpack.c.l.b16 %v371
  %v404 = vpack.c.b16 %v389, %v388
  %v405 = vpack.c.b16 %v391, %v390
  %v406 = vpack.c.b16 %v393, %v392
  %v407 = vpack.c.b16 %v395, %v394
  %v408 = vpack.c.b16 %v397, %v396
  %v409 = vpack.c.b16 %v399, %v398
  %v410 = vpack.c.b16 %v401, %v400
  %v411 = vpack.c.b16 %v403, %v402
  %420 = vmatpush.bf16.msra.mxu0 %v411
  %421 = vmatpush.bf16.msra.mxu0 %v410
  %422 = vmatpush.bf16.msra.mxu0 %v409
  %423 = vmatpush.bf16.msra.mxu0 %v408
  %424 = vmatpush.bf16.msra.mxu0 %v407
  %425 = vmatpush.bf16.msra.mxu0 %v406
  %426 = vmatpush.bf16.msra.mxu0 %v405
  %427 = vmatpush.bf16.msra.mxu0 %v404
  %428 = vmatmul.bf16.gmra.mxu0 %v348
  %v429 = vpop.f32.mrf.mxu0
  %v430 = vadd.f32 0.0, %v429
  %v431 = vpop.f32.mrf.mxu0
  %v432 = vadd.f32 0.0, %v431
  %433 = vmatmul.bf16.gmra.mxu0 %v349
  %v434 = vpop.f32.mrf.mxu0
  %v435 = vadd.f32 0.0, %v434
  %v436 = vpop.f32.mrf.mxu0
  %v437 = vadd.f32 0.0, %v436
  %438 = vmatmul.bf16.gmra.mxu0 %v350
  %v439 = vpop.f32.mrf.mxu0
  %v440 = vadd.f32 0.0, %v439
  %v441 = vpop.f32.mrf.mxu0
  %v442 = vadd.f32 0.0, %v441
  %443 = vmatmul.bf16.gmra.mxu0 %v351
  %v444 = vpop.f32.mrf.mxu0
  %v445 = vadd.f32 0.0, %v444
  %v446 = vpop.f32.mrf.mxu0
  %v447 = vadd.f32 0.0, %v446
  %448 = vmatmul.bf16.gmra.mxu0 %v352
  %v449 = vpop.f32.mrf.mxu0
  %v450 = vadd.f32 0.0, %v449
  %v451 = vpop.f32.mrf.mxu0
  %v452 = vadd.f32 0.0, %v451
  %453 = vmatmul.bf16.gmra.mxu0 %v353
  %v454 = vpop.f32.mrf.mxu0
  %v455 = vadd.f32 0.0, %v454
  %v456 = vpop.f32.mrf.mxu0
  %v457 = vadd.f32 0.0, %v456
  %458 = vmatmul.bf16.gmra.mxu0 %v354
  %v459 = vpop.f32.mrf.mxu0
  %v460 = vadd.f32 0.0, %v459
  %v461 = vpop.f32.mrf.mxu0
  %v462 = vadd.f32 0.0, %v461
  %463 = vmatmul.bf16.gmra.mxu0 %v355
  %v464 = vpop.f32.mrf.mxu0
  %v465 = vadd.f32 0.0, %v464
  %v466 = vpop.f32.mrf.mxu0
  %v467 = vadd.f32 0.0, %v466
  %468 = vdwg.mxu0
  %v469 = vpack.c.bf16 %v432, %v430
  %v470 = vpack.c.bf16 %v437, %v435
  %v471 = vpack.c.bf16 %v442, %v440
  %v472 = vpack.c.bf16 %v447, %v445
  %v473 = vpack.c.bf16 %v452, %v450
  %v474 = vpack.c.bf16 %v457, %v455
  %v475 = vpack.c.bf16 %v462, %v460
  %v476 = vpack.c.bf16 %v467, %v465
  %v477 = vld [vmem:[%s5] sm:$0x1]
  %v479 = vperm.slane %v477, 0
  %v497 = vunpack.c.l.b16 %v316
  %v498 = vunpack.c.l.b16 %v317
  %v499 = vunpack.c.l.b16 %v318
  %v500 = vunpack.c.l.b16 %v319
  %v501 = vunpack.c.l.b16 %v320
  %v502 = vunpack.c.l.b16 %v321
  %v503 = vunpack.c.l.b16 %v322
  %v504 = vunpack.c.l.b16 %v323
  %v505 = vunpack.c.l.b16 %v324
  %v506 = vunpack.c.l.b16 %v325
  %v507 = vunpack.c.l.b16 %v326
  %v508 = vunpack.c.l.b16 %v327
  %v509 = vunpack.c.l.b16 %v328
  %v510 = vunpack.c.l.b16 %v329
  %v511 = vunpack.c.l.b16 %v330
  %v512 = vunpack.c.l.b16 %v331
  %v513 = vpack.c.b16 %v498, %v497
  %v514 = vpack.c.b16 %v500, %v499
  %v515 = vpack.c.b16 %v502, %v501
  %v516 = vpack.c.b16 %v504, %v503
  %v517 = vpack.c.b16 %v506, %v505
  %v518 = vpack.c.b16 %v508, %v507
  %v519 = vpack.c.b16 %v510, %v509
  %v520 = vpack.c.b16 %v512, %v511
  %529 = vmatpush.bf16.msra.mxu0 %v476
  %530 = vmatpush.bf16.msra.mxu0 %v475
  %531 = vmatpush.bf16.msra.mxu0 %v474
  %532 = vmatpush.bf16.msra.mxu0 %v473
  %533 = vmatpush.bf16.msra.mxu0 %v472
  %534 = vmatpush.bf16.msra.mxu0 %v471
  %535 = vmatpush.bf16.msra.mxu0 %v470
  %536 = vmatpush.bf16.msra.mxu0 %v469
  %537 = vmatmul.bf16.gmra.mxu0 %v513
  %v538 = vpop.f32.mrf.mxu0
  %v539 = vadd.f32 %v479, %v538
  %v540 = vpop.f32.mrf.mxu0
  %v541 = vadd.f32 %v479, %v540
  %542 = vmatmul.bf16.gmra.mxu0 %v514
  %v543 = vpop.f32.mrf.mxu0
  %v544 = vadd.f32 %v479, %v543
  %v545 = vpop.f32.mrf.mxu0
  %v546 = vadd.f32 %v479, %v545
  %547 = vmatmul.bf16.gmra.mxu0 %v515
  %v548 = vpop.f32.mrf.mxu0
  %v549 = vadd.f32 %v479, %v548
  %v550 = vpop.f32.mrf.mxu0
  %v551 = vadd.f32 %v479, %v550
  %552 = vmatmul.bf16.gmra.mxu0 %v516
  %v553 = vpop.f32.mrf.mxu0
  %v554 = vadd.f32 %v479, %v553
  %v555 = vpop.f32.mrf.mxu0
  %v556 = vadd.f32 %v479, %v555
  %557 = vmatmul.bf16.gmra.mxu0 %v517
  %v558 = vpop.f32.mrf.mxu0
  %v559 = vadd.f32 %v479, %v558
  %v560 = vpop.f32.mrf.mxu0
  %v561 = vadd.f32 %v479, %v560
  %562 = vmatmul.bf16.gmra.mxu0 %v518
  %v563 = vpop.f32.mrf.mxu0
  %v564 = vadd.f32 %v479, %v563
  %v565 = vpop.f32.mrf.mxu0
  %v566 = vadd.f32 %v479, %v565
  %567 = vmatmul.bf16.gmra.mxu0 %v519
  %v568 = vpop.f32.mrf.mxu0
  %v569 = vadd.f32 %v479, %v568
  %v570 = vpop.f32.mrf.mxu0
  %v571 = vadd.f32 %v479, %v570
  %572 = vmatmul.bf16.gmra.mxu0 %v520
  %v573 = vpop.f32.mrf.mxu0
  %v574 = vadd.f32 %v479, %v573
  %v575 = vpop.f32.mrf.mxu0
  %v576 = vadd.f32 %v479, %v575
  %577 = vdwg.mxu0
  %v578 = vmax.f32 %v539, 0.0
  %v579 = vmax.f32 %v541, 0.0
  %v580 = vmax.f32 %v544, 0.0
  %v581 = vmax.f32 %v546, 0.0
  %v582 = vmax.f32 %v549, 0.0
  %v583 = vmax.f32 %v551, 0.0
  %v584 = vmax.f32 %v554, 0.0
  %v585 = vmax.f32 %v556, 0.0
  %v586 = vmax.f32 %v559, 0.0
  %v587 = vmax.f32 %v561, 0.0
  %v588 = vmax.f32 %v564, 0.0
  %v589 = vmax.f32 %v566, 0.0
  %v590 = vmax.f32 %v569, 0.0
  %v591 = vmax.f32 %v571, 0.0
  %v592 = vmax.f32 %v574, 0.0
  %v593 = vmax.f32 %v576, 0.0
  %594 = vst [vmem:[#allocation2] sm:$0xff] %v578
  %595 = vst [vmem:[#allocation2 + $0x8] sm:$0xff] %v579
  %596 = vst [vmem:[#allocation2 + $0x10] sm:$0xff] %v580
  %597 = vst [vmem:[#allocation2 + $0x18] sm:$0xff] %v581
  %598 = vst [vmem:[#allocation2 + $0x20] sm:$0xff] %v582
  %599 = vst [vmem:[#allocation2 + $0x28] sm:$0xff] %v583
  %600 = vst [vmem:[#allocation2 + $0x30] sm:$0xff] %v584
  %601 = vst [vmem:[#allocation2 + $0x38] sm:$0xff] %v585
  %602 = vst [vmem:[#allocation2 + $0x40] sm:$0xff] %v586
  %603 = vst [vmem:[#allocation2 + $0x48] sm:$0xff] %v587
  %604 = vst [vmem:[#allocation2 + $0x50] sm:$0xff] %v588
  %605 = vst [vmem:[#allocation2 + $0x58] sm:$0xff] %v589
  %606 = vst [vmem:[#allocation2 + $0x60] sm:$0xff] %v590
  %607 = vst [vmem:[#allocation2 + $0x68] sm:$0xff] %v591
  %608 = vst [vmem:[#allocation2 + $0x70] sm:$0xff] %v592
  %609 = vst [vmem:[#allocation2 + $0x78] sm:$0xff] %v593
  %v610 = vld [vmem:[#allocation2] sm:$0xff]
  %v611 = vld [vmem:[#allocation2 + $0x8] sm:$0xff]
  %v612 = vld [vmem:[#allocation2 + $0x10] sm:$0xff]
  %v613 = vld [vmem:[#allocation2 + $0x18] sm:$0xff]
  %v614 = vld [vmem:[#allocation2 + $0x20] sm:$0xff]
  %v615 = vld [vmem:[#allocation2 + $0x28] sm:$0xff]
  %v616 = vld [vmem:[#allocation2 + $0x30] sm:$0xff]
  %v617 = vld [vmem:[#allocation2 + $0x38] sm:$0xff]
  %v618 = vld [vmem:[#allocation2 + $0x40] sm:$0xff]
  %v619 = vld [vmem:[#allocation2 + $0x48] sm:$0xff]
  %v620 = vld [vmem:[#allocation2 + $0x50] sm:$0xff]
  %v621 = vld [vmem:[#allocation2 + $0x58] sm:$0xff]
  %v622 = vld [vmem:[#allocation2 + $0x60] sm:$0xff]
  %v623 = vld [vmem:[#allocation2 + $0x68] sm:$0xff]
  %v624 = vld [vmem:[#allocation2 + $0x70] sm:$0xff]
  %v625 = vld [vmem:[#allocation2 + $0x78] sm:$0xff]
  %v626 = vpack.c.bf16 %v611, %v610
  %v627 = vpack.c.bf16 %v613, %v612
  %v628 = vpack.c.bf16 %v615, %v614
  %v629 = vpack.c.bf16 %v617, %v616
  %v630 = vpack.c.bf16 %v619, %v618
  %v631 = vpack.c.bf16 %v621, %v620
  %v632 = vpack.c.bf16 %v623, %v622
  %v633 = vpack.c.bf16 %v625, %v624
  %s634 = scalar_lea.vmem %s4, 64
  %v635 = vld [vmem:[%s634] sm:$0xf]
  %v636 = vld [vmem:[%s634 + $0x4] sm:$0xf]
  %v637 = vld [vmem:[%s634 + $0x8] sm:$0xf]
  %v638 = vld [vmem:[%s634 + $0xc] sm:$0xf]
  %v639 = vld [vmem:[%s634 + $0x10] sm:$0xf]
  %v640 = vld [vmem:[%s634 + $0x14] sm:$0xf]
  %v641 = vld [vmem:[%s634 + $0x18] sm:$0xf]
  %v642 = vld [vmem:[%s634 + $0x1c] sm:$0xf]
  %v643 = vld [vmem:[%s634 + $0x20] sm:$0xf]
  %v644 = vld [vmem:[%s634 + $0x24] sm:$0xf]
  %v645 = vld [vmem:[%s634 + $0x28] sm:$0xf]
  %v646 = vld [vmem:[%s634 + $0x2c] sm:$0xf]
  %v647 = vld [vmem:[%s634 + $0x30] sm:$0xf]
  %v648 = vld [vmem:[%s634 + $0x34] sm:$0xf]
  %v649 = vld [vmem:[%s634 + $0x38] sm:$0xf]
  %v650 = vld [vmem:[%s634 + $0x3c] sm:$0xf]
  %v667 = vunpack.c.l.b16 %v635
  %v668 = vunpack.c.l.b16 %v636
  %v669 = vunpack.c.l.b16 %v637
  %v670 = vunpack.c.l.b16 %v638
  %v671 = vunpack.c.l.b16 %v639
  %v672 = vunpack.c.l.b16 %v640
  %v673 = vunpack.c.l.b16 %v641
  %v674 = vunpack.c.l.b16 %v642
  %v675 = vunpack.c.l.b16 %v643
  %v676 = vunpack.c.l.b16 %v644
  %v677 = vunpack.c.l.b16 %v645
  %v678 = vunpack.c.l.b16 %v646
  %v679 = vunpack.c.l.b16 %v647
  %v680 = vunpack.c.l.b16 %v648
  %v681 = vunpack.c.l.b16 %v649
  %v682 = vunpack.c.l.b16 %v650
  %v683 = vpack.c.b16 %v668, %v667
  %v684 = vpack.c.b16 %v670, %v669
  %v685 = vpack.c.b16 %v672, %v671
  %v686 = vpack.c.b16 %v674, %v673
  %v687 = vpack.c.b16 %v676, %v675
  %v688 = vpack.c.b16 %v678, %v677
  %v689 = vpack.c.b16 %v680, %v679
  %v690 = vpack.c.b16 %v682, %v681
  %699 = vmatpush.bf16.msra.mxu0 %v690
  %700 = vmatpush.bf16.msra.mxu0 %v689
  %701 = vmatpush.bf16.msra.mxu0 %v688
  %702 = vmatpush.bf16.msra.mxu0 %v687
  %703 = vmatpush.bf16.msra.mxu0 %v686
  %704 = vmatpush.bf16.msra.mxu0 %v685
  %705 = vmatpush.bf16.msra.mxu0 %v684
  %706 = vmatpush.bf16.msra.mxu0 %v683
  %707 = vmatmul.bf16.gmra.mxu0 %v626
  %v708 = vpop.f32.mrf.mxu0
  %v709 = vadd.f32 0.0, %v708
  %v710 = vpop.f32.mrf.mxu0
  %v711 = vadd.f32 0.0, %v710
  %712 = vmatmul.bf16.gmra.mxu0 %v627
  %v713 = vpop.f32.mrf.mxu0
  %v714 = vadd.f32 0.0, %v713
  %v715 = vpop.f32.mrf.mxu0
  %v716 = vadd.f32 0.0, %v715
  %717 = vmatmul.bf16.gmra.mxu0 %v628
  %v718 = vpop.f32.mrf.mxu0
  %v719 = vadd.f32 0.0, %v718
  %v720 = vpop.f32.mrf.mxu0
  %v721 = vadd.f32 0.0, %v720
  %722 = vmatmul.bf16.gmra.mxu0 %v629
  %v723 = vpop.f32.mrf.mxu0
  %v724 = vadd.f32 0.0, %v723
  %v725 = vpop.f32.mrf.mxu0
  %v726 = vadd.f32 0.0, %v725
  %727 = vmatmul.bf16.gmra.mxu0 %v630
  %v728 = vpop.f32.mrf.mxu0
  %v729 = vadd.f32 0.0, %v728
  %v730 = vpop.f32.mrf.mxu0
  %v731 = vadd.f32 0.0, %v730
  %732 = vmatmul.bf16.gmra.mxu0 %v631
  %v733 = vpop.f32.mrf.mxu0
  %v734 = vadd.f32 0.0, %v733
  %v735 = vpop.f32.mrf.mxu0
  %v736 = vadd.f32 0.0, %v735
  %737 = vmatmul.bf16.gmra.mxu0 %v632
  %v738 = vpop.f32.mrf.mxu0
  %v739 = vadd.f32 0.0, %v738
  %v740 = vpop.f32.mrf.mxu0
  %v741 = vadd.f32 0.0, %v740
  %742 = vmatmul.bf16.gmra.mxu0 %v633
  %v743 = vpop.f32.mrf.mxu0
  %v744 = vadd.f32 0.0, %v743
  %v745 = vpop.f32.mrf.mxu0
  %v746 = vadd.f32 0.0, %v745
  %747 = vdwg.mxu0
  %v748 = vpack.c.bf16 %v711, %v709
  %v749 = vpack.c.bf16 %v716, %v714
  %v750 = vpack.c.bf16 %v721, %v719
  %v751 = vpack.c.bf16 %v726, %v724
  %v752 = vpack.c.bf16 %v731, %v729
  %v753 = vpack.c.bf16 %v736, %v734
  %v754 = vpack.c.bf16 %v741, %v739
  %v755 = vpack.c.bf16 %v746, %v744
  %s756 = scalar_lea.vmem %s5, 1
  %v757 = vld [vmem:[%s756] sm:$0x1]
  %v759 = vperm.slane %v757, 0
  %761 = vmatpush.bf16.msra.mxu0 %v755
  %762 = vmatpush.bf16.msra.mxu0 %v754
  %763 = vmatpush.bf16.msra.mxu0 %v753
  %764 = vmatpush.bf16.msra.mxu0 %v752
  %765 = vmatpush.bf16.msra.mxu0 %v751
  %766 = vmatpush.bf16.msra.mxu0 %v750
  %767 = vmatpush.bf16.msra.mxu0 %v749
  %768 = vmatpush.bf16.msra.mxu0 %v748
  %769 = vmatmul.bf16.gmra.mxu0 %v513
  %v770 = vpop.f32.mrf.mxu0
  %v771 = vadd.f32 %v759, %v770
  %v772 = vpop.f32.mrf.mxu0
  %v773 = vadd.f32 %v759, %v772
  %774 = vmatmul.bf16.gmra.mxu0 %v514
  %v775 = vpop.f32.mrf.mxu0
  %v776 = vadd.f32 %v759, %v775
  %v777 = vpop.f32.mrf.mxu0
  %v778 = vadd.f32 %v759, %v777
  %779 = vmatmul.bf16.gmra.mxu0 %v515
  %v780 = vpop.f32.mrf.mxu0
  %v781 = vadd.f32 %v759, %v780
  %v782 = vpop.f32.mrf.mxu0
  %v783 = vadd.f32 %v759, %v782
  %784 = vmatmul.bf16.gmra.mxu0 %v516
  %v785 = vpop.f32.mrf.mxu0
  %v786 = vadd.f32 %v759, %v785
  %v787 = vpop.f32.mrf.mxu0
  %v788 = vadd.f32 %v759, %v787
  %789 = vmatmul.bf16.gmra.mxu0 %v517
  %v790 = vpop.f32.mrf.mxu0
  %v791 = vadd.f32 %v759, %v790
  %v792 = vpop.f32.mrf.mxu0
  %v793 = vadd.f32 %v759, %v792
  %794 = vmatmul.bf16.gmra.mxu0 %v518
  %v795 = vpop.f32.mrf.mxu0
  %v796 = vadd.f32 %v759, %v795
  %v797 = vpop.f32.mrf.mxu0
  %v798 = vadd.f32 %v759, %v797
  %799 = vmatmul.bf16.gmra.mxu0 %v519
  %v800 = vpop.f32.mrf.mxu0
  %v801 = vadd.f32 %v759, %v800
  %v802 = vpop.f32.mrf.mxu0
  %v803 = vadd.f32 %v759, %v802
  %804 = vmatmul.bf16.gmra.mxu0 %v520
  %v805 = vpop.f32.mrf.mxu0
  %v806 = vadd.f32 %v759, %v805
  %v807 = vpop.f32.mrf.mxu0
  %v808 = vadd.f32 %v759, %v807
  %809 = vdwg.mxu0
  %v810 = vmax.f32 %v771, 0.0
  %v811 = vmax.f32 %v773, 0.0
  %v812 = vmax.f32 %v776, 0.0
  %v813 = vmax.f32 %v778, 0.0
  %v814 = vmax.f32 %v781, 0.0
  %v815 = vmax.f32 %v783, 0.0
  %v816 = vmax.f32 %v786, 0.0
  %v817 = vmax.f32 %v788, 0.0
  %v818 = vmax.f32 %v791, 0.0
  %v819 = vmax.f32 %v793, 0.0
  %v820 = vmax.f32 %v796, 0.0
  %v821 = vmax.f32 %v798, 0.0
  %v822 = vmax.f32 %v801, 0.0
  %v823 = vmax.f32 %v803, 0.0
  %v824 = vmax.f32 %v806, 0.0
  %v825 = vmax.f32 %v808, 0.0
  %826 = vst [vmem:[#allocation2] sm:$0xff] %v810
  %827 = vst [vmem:[#allocation2 + $0x8] sm:$0xff] %v811
  %828 = vst [vmem:[#allocation2 + $0x10] sm:$0xff] %v812
  %829 = vst [vmem:[#allocation2 + $0x18] sm:$0xff] %v813
  %830 = vst [vmem:[#allocation2 + $0x20] sm:$0xff] %v814
  %831 = vst [vmem:[#allocation2 + $0x28] sm:$0xff] %v815
  %832 = vst [vmem:[#allocation2 + $0x30] sm:$0xff] %v816
  %833 = vst [vmem:[#allocation2 + $0x38] sm:$0xff] %v817
  %834 = vst [vmem:[#allocation2 + $0x40] sm:$0xff] %v818
  %835 = vst [vmem:[#allocation2 + $0x48] sm:$0xff] %v819
  %836 = vst [vmem:[#allocation2 + $0x50] sm:$0xff] %v820
  %837 = vst [vmem:[#allocation2 + $0x58] sm:$0xff] %v821
  %838 = vst [vmem:[#allocation2 + $0x60] sm:$0xff] %v822
  %839 = vst [vmem:[#allocation2 + $0x68] sm:$0xff] %v823
  %840 = vst [vmem:[#allocation2 + $0x70] sm:$0xff] %v824
  %841 = vst [vmem:[#allocation2 + $0x78] sm:$0xff] %v825
  %v842 = vld [vmem:[#allocation2] sm:$0xff]
  %v843 = vld [vmem:[#allocation2 + $0x8] sm:$0xff]
  %v844 = vld [vmem:[#allocation2 + $0x10] sm:$0xff]
  %v845 = vld [vmem:[#allocation2 + $0x18] sm:$0xff]
  %v846 = vld [vmem:[#allocation2 + $0x20] sm:$0xff]
  %v847 = vld [vmem:[#allocation2 + $0x28] sm:$0xff]
  %v848 = vld [vmem:[#allocation2 + $0x30] sm:$0xff]
  %v849 = vld [vmem:[#allocation2 + $0x38] sm:$0xff]
  %v850 = vld [vmem:[#allocation2 + $0x40] sm:$0xff]
  %v851 = vld [vmem:[#allocation2 + $0x48] sm:$0xff]
  %v852 = vld [vmem:[#allocation2 + $0x50] sm:$0xff]
  %v853 = vld [vmem:[#allocation2 + $0x58] sm:$0xff]
  %v854 = vld [vmem:[#allocation2 + $0x60] sm:$0xff]
  %v855 = vld [vmem:[#allocation2 + $0x68] sm:$0xff]
  %v856 = vld [vmem:[#allocation2 + $0x70] sm:$0xff]
  %v857 = vld [vmem:[#allocation2 + $0x78] sm:$0xff]
  %858 = vst [vmem:[%s6] sm:$0xff] %v842
  %859 = vst [vmem:[%s6 + $0x8] sm:$0xff] %v843
  %860 = vst [vmem:[%s6 + $0x10] sm:$0xff] %v844
  %861 = vst [vmem:[%s6 + $0x18] sm:$0xff] %v845
  %862 = vst [vmem:[%s6 + $0x20] sm:$0xff] %v846
  %863 = vst [vmem:[%s6 + $0x28] sm:$0xff] %v847
  %864 = vst [vmem:[%s6 + $0x30] sm:$0xff] %v848
  %865 = vst [vmem:[%s6 + $0x38] sm:$0xff] %v849
  %866 = vst [vmem:[%s6 + $0x40] sm:$0xff] %v850
  %867 = vst [vmem:[%s6 + $0x48] sm:$0xff] %v851
  %868 = vst [vmem:[%s6 + $0x50] sm:$0xff] %v852
  %869 = vst [vmem:[%s6 + $0x58] sm:$0xff] %v853
  %870 = vst [vmem:[%s6 + $0x60] sm:$0xff] %v854
  %871 = vst [vmem:[%s6 + $0x68] sm:$0xff] %v855
  %872 = vst [vmem:[%s6 + $0x70] sm:$0xff] %v856
  %873 = vst [vmem:[%s6 + $0x78] sm:$0xff] %v857
  // Predicated region
  $region26: #{gcn_model_forward.1} parent=0 // pred_check
    _
  $region27: #{gcn_model_forward.1} parent=0 // pred_check_branch
    %875 = sbr.rel (0) target = $region29
  $region28: #{gcn_model_forward.1} parent=0 // pred_region
    _
  $region29: #{gcn_model_forward.1} parent=0 // pred_fallthru
    _
  // Predicated region
  $region30: #{gcn_model_forward.1} parent=0 // pred_check
    _
  $region31: #{gcn_model_forward.1} parent=0 // pred_check_branch
    %877 = sbr.rel (0) target = $region33
  $region32: #{gcn_model_forward.1} parent=0 // pred_region
    _
  $region33: #{gcn_model_forward.1} parent=0 // pred_fallthru
    _

</llo_original>
